<compile_context>
chip_gen: v6e
topology: v6e:2x2x1
jax: 0.10.0
libtpu: 0.0.40
codegen_flags: <defaults>
</compile_context>

<pallas_src>
import jax
import jax.numpy as jnp
from jax.experimental import pallas as pl
from jax.experimental.pallas import tpu as pltpu


def _make_kernel(n_layers):
    def kernel(*refs):
        # refs = [x, w0, b0, w1, b1, ..., slopes, out]
        x_ref = refs[0]
        slopes_ref = refs[1 + 2 * n_layers]   # SMEM, shape (n_layers,)
        out_ref = refs[2 + 2 * n_layers]

        h = x_ref[...].astype(jnp.float32)    # (Cin0, tile_hw), spatial on lanes
        for i in range(n_layers):
            w = refs[1 + 2 * i][...].astype(jnp.float32)   # (Cout_i, Cin_i)
            b = refs[2 + 2 * i][...].astype(jnp.float32)   # (Cout_i, 1)
            a = slopes_ref[i]                              # scalar PReLU slope
            h = jnp.dot(w, h, preferred_element_type=jnp.float32) + b
            h = jnp.where(h > 0, h, a * h)                 # PReLU
        out_ref[...] = h.astype(out_ref.dtype)
    return kernel


def pixelwise_linear(x_nchw, params, *, tile_hw_max=8192):
    """params: list of (weight (Cout, Cin), bias (Cout,), prelu_slope scalar)."""
    n_layers = len(params)
    N, C, H, W = x_nchw.shape
    HW = H * W
    c_out_last = params[-1][0].shape[0]

    # Spatial axis goes on lanes; tile it as large as practical (lane-dense).
    hw_aligned = pl.cdiv(HW, 128) * 128
    tile_hw = min(tile_hw_max, hw_aligned)
    HW_pad = pl.cdiv(HW, tile_hw) * tile_hw

    # Free reshape (no transpose, contiguous dims).
    x = x_nchw.reshape(N, C, HW)
    if HW_pad != HW:
        x = jnp.pad(x, ((0, 0), (0, 0), (0, HW_pad - HW)))

    operands = [x]
    in_specs = [pl.BlockSpec((None, C, tile_hw), lambda n, j: (n, 0, j))]
    slopes = []
    for (w, b, a) in params:
        c_out, c_in = w.shape
        operands.append(jnp.asarray(w, jnp.float32).reshape(c_out, c_in))
        operands.append(jnp.asarray(b, jnp.float32).reshape(c_out, 1))
        in_specs.append(pl.BlockSpec((c_out, c_in), lambda n, j: (0, 0)))
        in_specs.append(pl.BlockSpec((c_out, 1), lambda n, j: (0, 0)))
        slopes.append(jnp.asarray(a, jnp.float32).reshape(()))
    operands.append(jnp.stack(slopes))  # (n_layers,) PReLU slopes -> SMEM
    in_specs.append(pl.BlockSpec(memory_space=pltpu.MemorySpace.SMEM))

    grid = (N, HW_pad // tile_hw)
    out = pl.pallas_call(
        _make_kernel(n_layers),
        out_shape=jax.ShapeDtypeStruct((N, c_out_last, HW_pad), x_nchw.dtype),
        grid=grid,
        in_specs=in_specs,
        out_specs=pl.BlockSpec((None, c_out_last, tile_hw),
                               lambda n, j: (n, 0, j)),
        compiler_params=pltpu.CompilerParams(
            dimension_semantics=("parallel", "parallel")),
    )(*operands)

    if HW_pad != HW:
        out = out[:, :, :HW]
    return out.reshape(N, c_out_last, H, W)  # free reshape back to NCHW


def init_params(key, fin, fout):
    """Deterministic params matching Conv2d(kernel_size=1, bias=True)+PReLU."""
    params = []
    for ci, co in zip(fin, fout):
        key, kw, kb = jax.random.split(key, 3)
        bound = 1.0 / (ci ** 0.5)  # PyTorch Conv2d default init bound (k=1)
        w = jax.random.uniform(kw, (co, ci), jnp.float32, -bound, bound)
        b = jax.random.uniform(kb, (co,), jnp.float32, -bound, bound)
        a = jnp.float32(0.25)      # PReLU default init
        params.append((w, b, a))
    return params


def reference(x_nchw, params):
    h = x_nchw.astype(jnp.float32)
    for (w, b, a) in params:
        h = jnp.einsum("oc,nchw->nohw", w, h) + b[None, :, None, None]
        h = jnp.where(h > 0, h, a * h)
    return h


if __name__ == "__main__":
    key = jax.random.PRNGKey(0)
    # PixelwiseLinear(fin=[4, 8], fout=[8, 6], last_activation=None)
    fin, fout = [4, 8], [8, 6]
    kx, kp = jax.random.split(key)
    x = jax.random.normal(kx, (2, 4, 16, 16), jnp.float32)  # NCHW
    params = init_params(kp, fin, fout)

    y = pixelwise_linear(x, params)
    jax.block_until_ready(y)

    y_ref = reference(x, params)
    assert y.shape == (2, 6, 16, 16)
    assert jnp.allclose(y, y_ref, atol=1e-5, rtol=1e-5)
    print("KERNEL_OK")
</pallas_src>

<mosaic_0001>
module attributes {stable_mosaic.version = 11 : i64} {
  func.func @kernel(%arg0: i32, %arg1: i32, %arg2: memref<1x4x256xf32, #tpu.memory_space<vmem>>, %arg3: memref<8x4xf32, #tpu.memory_space<vmem>>, %arg4: memref<8x1xf32, #tpu.memory_space<vmem>>, %arg5: memref<6x8xf32, #tpu.memory_space<vmem>>, %arg6: memref<6x1xf32, #tpu.memory_space<vmem>>, %arg7: memref<2xf32, #tpu.memory_space<smem>>, %arg8: memref<1x6x256xf32, #tpu.memory_space<vmem>>) attributes {dimension_semantics = [#tpu.dimension_semantics<parallel>, #tpu.dimension_semantics<parallel>], iteration_bounds = array<i64: 2, 1>, scalar_prefetch = 0 : i64, scratch_operands = 0 : i64, tpu.core_type = #tpu.core_type<tc>, window_params = [{transform_indices = @transform_0, window_bounds = array<i64: 1, 4, 256>}, {pipeline_mode = #tpu.pipeline_mode<synchronous>, transform_indices = @transform_1, window_bounds = array<i64: 8, 4>}, {pipeline_mode = #tpu.pipeline_mode<synchronous>, transform_indices = @transform_2, window_bounds = array<i64: 8, 1>}, {pipeline_mode = #tpu.pipeline_mode<synchronous>, transform_indices = @transform_3, window_bounds = array<i64: 6, 8>}, {pipeline_mode = #tpu.pipeline_mode<synchronous>, transform_indices = @transform_4, window_bounds = array<i64: 6, 1>}, {transform_indices = @transform_5, window_bounds = array<i64: 2>}, {transform_indices = @transform_6, window_bounds = array<i64: 1, 6, 256>}]} {
    %c0 = arith.constant 0 : index
    %c0_0 = arith.constant 0 : index
    %c0_1 = arith.constant 0 : index
    %0 = vector.load %arg2[%c0, %c0_0, %c0_1] : memref<1x4x256xf32, #tpu.memory_space<vmem>>, vector<1x4x256xf32>
    %1 = vector.shape_cast %0 : vector<1x4x256xf32> to vector<4x256xf32>
    %c0_2 = arith.constant 0 : index
    %c0_3 = arith.constant 0 : index
    %2 = vector.load %arg3[%c0_2, %c0_3] : memref<8x4xf32, #tpu.memory_space<vmem>>, vector<8x4xf32>
    %c0_4 = arith.constant 0 : index
    %c0_5 = arith.constant 0 : index
    %3 = vector.load %arg4[%c0_4, %c0_5] : memref<8x1xf32, #tpu.memory_space<vmem>>, vector<8x1xf32>
    %c0_6 = arith.constant 0 : index
    %4 = memref.load %arg7[%c0_6] : memref<2xf32, #tpu.memory_space<smem>>
    %cst = arith.constant dense<0.000000e+00> : vector<8x256xf32>
    %5 = tpu.matmul %2, %1, %cst {dimension_numbers = #tpu.dot_dimension_numbers<[1], [0], [0], [1], [0, 0, 1, 1], [], []>} : vector<8x4xf32>, vector<4x256xf32>, vector<8x256xf32> -> vector<8x256xf32>
    %6 = vector.broadcast %3 : vector<8x1xf32> to vector<8x256xf32>
    %7 = arith.addf %5, %6 : vector<8x256xf32>
    %cst_7 = arith.constant 0.000000e+00 : f32
    %8 = vector.broadcast %cst_7 : f32 to vector<8x256xf32>
    %9 = arith.cmpf ogt, %7, %8 : vector<8x256xf32>
    %10 = vector.broadcast %4 : f32 to vector<8x256xf32>
    %11 = arith.mulf %10, %7 : vector<8x256xf32>
    %12 = arith.select %9, %7, %11 : vector<8x256xi1>, vector<8x256xf32>
    %c0_8 = arith.constant 0 : index
    %c0_9 = arith.constant 0 : index
    %13 = vector.load %arg5[%c0_8, %c0_9] : memref<6x8xf32, #tpu.memory_space<vmem>>, vector<6x8xf32>
    %c0_10 = arith.constant 0 : index
    %c0_11 = arith.constant 0 : index
    %14 = vector.load %arg6[%c0_10, %c0_11] : memref<6x1xf32, #tpu.memory_space<vmem>>, vector<6x1xf32>
    %c1 = arith.constant 1 : index
    %15 = memref.load %arg7[%c1] : memref<2xf32, #tpu.memory_space<smem>>
    %cst_12 = arith.constant dense<0.000000e+00> : vector<6x256xf32>
    %16 = tpu.matmul %13, %12, %cst_12 {dimension_numbers = #tpu.dot_dimension_numbers<[1], [0], [0], [1], [0, 0, 1, 1], [], []>} : vector<6x8xf32>, vector<8x256xf32>, vector<6x256xf32> -> vector<6x256xf32>
    %17 = vector.broadcast %14 : vector<6x1xf32> to vector<6x256xf32>
    %18 = arith.addf %16, %17 : vector<6x256xf32>
    %cst_13 = arith.constant 0.000000e+00 : f32
    %19 = vector.broadcast %cst_13 : f32 to vector<6x256xf32>
    %20 = arith.cmpf ogt, %18, %19 : vector<6x256xf32>
    %21 = vector.broadcast %15 : f32 to vector<6x256xf32>
    %22 = arith.mulf %21, %18 : vector<6x256xf32>
    %23 = arith.select %20, %18, %22 : vector<6x256xi1>, vector<6x256xf32>
    %c0_14 = arith.constant 0 : index
    %c0_15 = arith.constant 0 : index
    %c0_16 = arith.constant 0 : index
    %24 = vector.load %arg8[%c0_14, %c0_15, %c0_16] : memref<1x6x256xf32, #tpu.memory_space<vmem>>, vector<1x6x256xf32>
    %25 = vector.shape_cast %24 : vector<1x6x256xf32> to vector<6x256xf32>
    %26 = vector.shape_cast %23 : vector<6x256xf32> to vector<1x6x256xf32>
    tpu.vector_store %arg8[%c0_14, %c0_15, %c0_16], %26 {strides = array<i32>} : memref<1x6x256xf32, #tpu.memory_space<vmem>>, vector<1x6x256xf32>,
    return
  }
  func.func @transform_0(%arg0: i32, %arg1: i32) -> (i32, i32, i32) {
    %c0_i32 = arith.constant 0 : i32
    %c0_i32_0 = arith.constant 0 : i32
    return %arg0, %c0_i32, %arg1 : i32, i32, i32
  }
  func.func @transform_1(%arg0: i32, %arg1: i32) -> (i32, i32) {
    %c0_i32 = arith.constant 0 : i32
    %c0_i32_0 = arith.constant 0 : i32
    %c0_i32_1 = arith.constant 0 : i32
    return %c0_i32, %c0_i32_0 : i32, i32
  }
  func.func @transform_2(%arg0: i32, %arg1: i32) -> (i32, i32) {
    %c0_i32 = arith.constant 0 : i32
    %c0_i32_0 = arith.constant 0 : i32
    %c0_i32_1 = arith.constant 0 : i32
    return %c0_i32, %c0_i32_0 : i32, i32
  }
  func.func @transform_3(%arg0: i32, %arg1: i32) -> (i32, i32) {
    %c0_i32 = arith.constant 0 : i32
    %c0_i32_0 = arith.constant 0 : i32
    %c0_i32_1 = arith.constant 0 : i32
    return %c0_i32, %c0_i32_0 : i32, i32
  }
  func.func @transform_4(%arg0: i32, %arg1: i32) -> (i32, i32) {
    %c0_i32 = arith.constant 0 : i32
    %c0_i32_0 = arith.constant 0 : i32
    %c0_i32_1 = arith.constant 0 : i32
    return %c0_i32, %c0_i32_0 : i32, i32
  }
  func.func @transform_5(%arg0: i32, %arg1: i32) -> i32 {
    %c0_i32 = arith.constant 0 : i32
    %c0_i32_0 = arith.constant 0 : i32
    return %c0_i32 : i32
  }
  func.func @transform_6(%arg0: i32, %arg1: i32) -> (i32, i32, i32) {
    %c0_i32 = arith.constant 0 : i32
    %c0_i32_0 = arith.constant 0 : i32
    return %arg0, %c0_i32, %arg1 : i32, i32, i32
  }
}

</mosaic_0001>

<llo_original>
// kernel: tpu_custom_call.1
$region0: #{tpu_custom_call.1}
  #allocation0 [shape = 'u32[]', space=smem, size = 0x4, offset = 0x4, fixed_abs, tag = 'smem constant byte address 0x4 - core index']
  #allocation1 [shape = 'u32[144,128]{1,0:T(1,128)}', space=vmem, size = 0x12000, scoped, tag = 'internal scratch']
  %s0 = inlined_call_operand.vmem [shape: f32[2,4,256], index: 0, kind: input, shape index: {}]
  %s1 = inlined_call_operand.vmem [shape: f32[8,4], index: 1, kind: input, shape index: {}]
  %s2 = inlined_call_operand.vmem [shape: f32[8,1], index: 2, kind: input, shape index: {}]
  %s3 = inlined_call_operand.vmem [shape: f32[6,8], index: 3, kind: input, shape index: {}]
  %s4 = inlined_call_operand.vmem [shape: f32[6,1], index: 4, kind: input, shape index: {}]
  %s5 = inlined_call_operand.vmem [shape: f32[2], index: 5, kind: input, shape index: {}]
  %s6 = inlined_call_operand.vmem [shape: f32[2,6,256], index: 6, kind: output, shape index: {}]
  %s7 = sld [smem:[#allocation0]]
  $region61: #{tpu_custom_call.1} parent=0
    _
  %s9 = ssub.s32 1, %s7
  %s10 = scalar_select 0, %s9, %s7
  $region1: #{tpu_custom_call.1} parent=0
    #allocation2 [shape = 'u8[512]{0}', space=smem, size = 0x200, scoped, tag = 'input window, operand 5, single buffered']
    #allocation3 [shape = 's32[2]{0}', space=sflag, size = 0x8, scoped, tag = 'scoped memory for tpu_custom_call.1']
    %11 = vsyncpa [#allocation3], 0
    loop: start=0, step=1, limit=4
    $region2: #{tpu_custom_call.1} parent=1 // loop_pre_header
      _
    $region3: #{tpu_custom_call.1} parent=1 // loop_header
      %s13 = sphi 0, %s17
      %p14 = scmp.ge.s32.totalorder %s13, 4
      %s20 = sphi 0, %s32
      %s21 = sphi 0, %s28
      %s22 = sphi 0, %s20
      %s23 = sphi 0, %s21
      %s24 = sphi 0, %s22
      %s25 = sphi 0, %s23
      %s37 = sphi 0, %s39
      %s40 = sphi 0, %s37
      %s41 = sphi 0, %s40
      %s57 = sphi 0, %s41
      %s61 = sphi 0, %s61
      %s63 = sphi 0, %s61
      %s64 = sphi 0, %s63
      %s78 = sphi 0, %s64
      %s82 = sphi 0, %s82
      %s84 = sphi 0, %s82
      %s85 = sphi 0, %s84
      %s99 = sphi 0, %s85
      %s103 = sphi 0, %s103
      %s105 = sphi 0, %s103
      %s106 = sphi 0, %s105
      %s120 = sphi 0, %s106
      %s124 = sphi 0, %s124
      %s126 = sphi 0, %s124
      %s127 = sphi 0, %s126
      %s141 = sphi 0, %s127
      %s145 = sphi 0, %s145
      %s147 = sphi 0, %s145
      %s148 = sphi 0, %s147
      %s162 = sphi 0, %s148
      %s170 = sphi 0, %s172
      %s173 = sphi 0, %s170
      %s174 = sphi 0, %s173
      %s190 = sphi 0, %s174
    $region4: #{tpu_custom_call.1} parent=1 // loop_header_branch
      %16 = sbr.rel (%p14) target = $region8
    $region5: #{tpu_custom_call.1} parent=1 // loop_body
      %s18 = ssub.s32 %s13, 1
      %s19 = ssub.s32 %s13, 2
      %s26 = sadd.s32 1, %s21
      %p27 = scmp.ge.s32.totalorder %s26, 1
      %s28 = scalar_select %p27, 0, %s26
      %s29 = sadd.s32 1, %s20
      %s30 = scalar_select %p27, %s29, %s20
      %p31 = scmp.ge.s32.totalorder %s30, 2
      %s32 = scalar_select %p31, 0, %s30
      %s33 = ssub.s32 %s20, %s32
      %s34 = ssub.s32 %s21, %s28
      %s35 = sor.u32 %s33, %s34
      %p36 = scmp.eq.s32.totalorder %s35, 0
      %s38 = sadd.s32 %s37, 1
      %s39 = scalar_select %p36, %s37, %s38
      %p42 = pneg %p36
      %p43 = scmp.eq.s32.totalorder %s13, 1
      %p44 = por %p42, %p43
      %p45 = scmp.ne.s32.totalorder %s37, %s40
      %p46 = scmp.eq.s32.totalorder %s13, 0
      %p47 = por %p45, %p46
      %p48 = scmp.ne.s32.totalorder %s37, %s40
      %p49 = scmp.eq.s32.totalorder %s18, 1
      %p50 = por %p48, %p49
      %p51 = scmp.ne.s32.totalorder %s40, %s41
      %p52 = scmp.eq.s32.totalorder %s18, 0
      %p53 = por %p51, %p52
      %p54 = scmp.ne.s32.totalorder %s40, %s41
      %p55 = scmp.eq.s32.totalorder %s19, 1
      %p56 = por %p54, %p55
      %p58 = scmp.ne.s32.totalorder %s41, %s57
      %p59 = scmp.eq.s32.totalorder %s19, 0
      %p60 = por %p58, %p59
      %s62 = sadd.s32 %s61, 1
      %p65 = scmp.eq.s32.totalorder %s13, 1
      %p66 = scmp.ne.s32.totalorder %s61, %s63
      %p67 = scmp.eq.s32.totalorder %s13, 0
      %p68 = por %p66, %p67
      %p69 = scmp.ne.s32.totalorder %s61, %s63
      %p70 = scmp.eq.s32.totalorder %s18, 1
      %p71 = por %p69, %p70
      %p72 = scmp.ne.s32.totalorder %s63, %s64
      %p73 = scmp.eq.s32.totalorder %s18, 0
      %p74 = por %p72, %p73
      %p75 = scmp.ne.s32.totalorder %s63, %s64
      %p76 = scmp.eq.s32.totalorder %s19, 1
      %p77 = por %p75, %p76
      %p79 = scmp.ne.s32.totalorder %s64, %s78
      %p80 = scmp.eq.s32.totalorder %s19, 0
      %p81 = por %p79, %p80
      %s83 = sadd.s32 %s82, 1
      %p86 = scmp.eq.s32.totalorder %s13, 1
      %p87 = scmp.ne.s32.totalorder %s82, %s84
      %p88 = scmp.eq.s32.totalorder %s13, 0
      %p89 = por %p87, %p88
      %p90 = scmp.ne.s32.totalorder %s82, %s84
      %p91 = scmp.eq.s32.totalorder %s18, 1
      %p92 = por %p90, %p91
      %p93 = scmp.ne.s32.totalorder %s84, %s85
      %p94 = scmp.eq.s32.totalorder %s18, 0
      %p95 = por %p93, %p94
      %p96 = scmp.ne.s32.totalorder %s84, %s85
      %p97 = scmp.eq.s32.totalorder %s19, 1
      %p98 = por %p96, %p97
      %p100 = scmp.ne.s32.totalorder %s85, %s99
      %p101 = scmp.eq.s32.totalorder %s19, 0
      %p102 = por %p100, %p101
      %s104 = sadd.s32 %s103, 1
      %p107 = scmp.eq.s32.totalorder %s13, 1
      %p108 = scmp.ne.s32.totalorder %s103, %s105
      %p109 = scmp.eq.s32.totalorder %s13, 0
      %p110 = por %p108, %p109
      %p111 = scmp.ne.s32.totalorder %s103, %s105
      %p112 = scmp.eq.s32.totalorder %s18, 1
      %p113 = por %p111, %p112
      %p114 = scmp.ne.s32.totalorder %s105, %s106
      %p115 = scmp.eq.s32.totalorder %s18, 0
      %p116 = por %p114, %p115
      %p117 = scmp.ne.s32.totalorder %s105, %s106
      %p118 = scmp.eq.s32.totalorder %s19, 1
      %p119 = por %p117, %p118
      %p121 = scmp.ne.s32.totalorder %s106, %s120
      %p122 = scmp.eq.s32.totalorder %s19, 0
      %p123 = por %p121, %p122
      %s125 = sadd.s32 %s124, 1
      %p128 = scmp.eq.s32.totalorder %s13, 1
      %p129 = scmp.ne.s32.totalorder %s124, %s126
      %p130 = scmp.eq.s32.totalorder %s13, 0
      %p131 = por %p129, %p130
      %p132 = scmp.ne.s32.totalorder %s124, %s126
      %p133 = scmp.eq.s32.totalorder %s18, 1
      %p134 = por %p132, %p133
      %p135 = scmp.ne.s32.totalorder %s126, %s127
      %p136 = scmp.eq.s32.totalorder %s18, 0
      %p137 = por %p135, %p136
      %p138 = scmp.ne.s32.totalorder %s126, %s127
      %p139 = scmp.eq.s32.totalorder %s19, 1
      %p140 = por %p138, %p139
      %p142 = scmp.ne.s32.totalorder %s127, %s141
      %p143 = scmp.eq.s32.totalorder %s19, 0
      %p144 = por %p142, %p143
      %s146 = sadd.s32 %s145, 1
      %p149 = scmp.eq.s32.totalorder %s13, 1
      %p150 = scmp.ne.s32.totalorder %s145, %s147
      %p151 = scmp.eq.s32.totalorder %s13, 0
      %p152 = por %p150, %p151
      %p153 = scmp.ne.s32.totalorder %s145, %s147
      %p154 = scmp.eq.s32.totalorder %s18, 1
      %p155 = por %p153, %p154
      %p156 = scmp.ne.s32.totalorder %s147, %s148
      %p157 = scmp.eq.s32.totalorder %s18, 0
      %p158 = por %p156, %p157
      %p159 = scmp.ne.s32.totalorder %s147, %s148
      %p160 = scmp.eq.s32.totalorder %s19, 1
      %p161 = por %p159, %p160
      %p163 = scmp.ne.s32.totalorder %s148, %s162
      %p164 = scmp.eq.s32.totalorder %s19, 0
      %p165 = por %p163, %p164
      %s166 = ssub.s32 %s20, %s32
      %s167 = ssub.s32 %s21, %s28
      %s168 = sor.u32 %s166, %s167
      %p169 = scmp.eq.s32.totalorder %s168, 0
      %s171 = sadd.s32 %s170, 1
      %s172 = scalar_select %p169, %s170, %s171
      %p175 = pneg %p169
      %p176 = scmp.eq.s32.totalorder %s13, 1
      %p177 = por %p175, %p176
      %p178 = scmp.ne.s32.totalorder %s170, %s173
      %p179 = scmp.eq.s32.totalorder %s13, 0
      %p180 = por %p178, %p179
      %p181 = scmp.ne.s32.totalorder %s170, %s173
      %p182 = scmp.eq.s32.totalorder %s18, 1
      %p183 = por %p181, %p182
      %p184 = scmp.ne.s32.totalorder %s173, %s174
      %p185 = scmp.eq.s32.totalorder %s18, 0
      %p186 = por %p184, %p185
      %p187 = scmp.ne.s32.totalorder %s173, %s174
      %p188 = scmp.eq.s32.totalorder %s19, 1
      %p189 = por %p187, %p188
      %p191 = scmp.ne.s32.totalorder %s174, %s190
      %p192 = scmp.eq.s32.totalorder %s19, 0
      %p193 = por %p191, %p192
      %p194 = scmp.le.s32.totalorder 1, %s13
      %p195 = scmp.lt.s32.totalorder %s13, 3
      %p196 = pnand %p194, %p195
      %p197 = pneg %p196
      // Predicated region
      $region9: #{tpu_custom_call.1} parent=5 // pred_check
        _
      $region10: #{tpu_custom_call.1} parent=5 // pred_check_branch
        %199 = sbr.rel (%p196) target = $region12
      $region11: #{tpu_custom_call.1} parent=5 // pred_region
        %s200 = ssub.s32 %s13, 1
        // Predicated region
        $region13: #{tpu_custom_call.1} parent=11 // pred_check
          %p201 = pneg %p74
        $region14: #{tpu_custom_call.1} parent=11 // pred_check_branch
          %203 = sbr.rel (%p201) target = $region16
        $region15: #{tpu_custom_call.1} parent=11 // pred_region
          _
        $region16: #{tpu_custom_call.1} parent=11 // pred_fallthru
          _
        // Predicated region
        $region17: #{tpu_custom_call.1} parent=11 // pred_check
          %p204 = pneg %p95
        $region18: #{tpu_custom_call.1} parent=11 // pred_check_branch
          %206 = sbr.rel (%p204) target = $region20
        $region19: #{tpu_custom_call.1} parent=11 // pred_region
          _
        $region20: #{tpu_custom_call.1} parent=11 // pred_fallthru
          _
        // Predicated region
        $region21: #{tpu_custom_call.1} parent=11 // pred_check
          %p207 = pneg %p116
        $region22: #{tpu_custom_call.1} parent=11 // pred_check_branch
          %209 = sbr.rel (%p207) target = $region24
        $region23: #{tpu_custom_call.1} parent=11 // pred_region
          _
        $region24: #{tpu_custom_call.1} parent=11 // pred_fallthru
          _
        // Predicated region
        $region25: #{tpu_custom_call.1} parent=11 // pred_check
          %p210 = pneg %p137
        $region26: #{tpu_custom_call.1} parent=11 // pred_check_branch
          %212 = sbr.rel (%p210) target = $region28
        $region27: #{tpu_custom_call.1} parent=11 // pred_region
          _
        $region28: #{tpu_custom_call.1} parent=11 // pred_fallthru
          _
        // Predicated region
        $region29: #{tpu_custom_call.1} parent=11 // pred_check
          %p213 = pneg %p158
        $region30: #{tpu_custom_call.1} parent=11 // pred_check_branch
          %215 = sbr.rel (%p213) target = $region32
        $region31: #{tpu_custom_call.1} parent=11 // pred_region
          %s217 = ssub.s32 16, 16
          %218 = vsyncadd [#allocation3], %s217
          %s220 = sshll.u32 %s5, 4
          %s221 = int_to_ptr.vmem [resolvable:$true] %s220
          %223 = dma.vmem_to_smem %s221, 16, [#allocation2], [#allocation3]
        $region32: #{tpu_custom_call.1} parent=11 // pred_fallthru
          _
      $region12: #{tpu_custom_call.1} parent=5 // pred_fallthru
        _
      %p224 = scmp.lt.s32.totalorder %s13, 2
      // Predicated region
      $region33: #{tpu_custom_call.1} parent=5 // pred_check
        %p225 = pneg %p224
      $region34: #{tpu_custom_call.1} parent=5 // pred_check_branch
        %227 = sbr.rel (%p225) target = $region36
      $region35: #{tpu_custom_call.1} parent=5 // pred_region
        // Predicated region
        $region37: #{tpu_custom_call.1} parent=35 // pred_check
          %p228 = pneg %p47
        $region38: #{tpu_custom_call.1} parent=35 // pred_check_branch
          %230 = sbr.rel (%p228) target = $region40
        $region39: #{tpu_custom_call.1} parent=35 // pred_region
          %s231 = smul.u32 2, %s21
          %p232 = scmp.lt.s32.totalorder %s20, 1
          %s233 = scalar_select %p232, %s20, 1
          %p234 = scmp.lt.s32.totalorder %s231, 1
          %s235 = scalar_select %p234, %s231, 1
          %s236 = smul.addr %s233, 2
          %s237 = sadd.s32 %s235, %s236
          %s238 = smul.addr %s237, 4
          %s239 = scalar_lea.vmem %s0, %s238
          %s240 = smul.u32 2, %s21
        $region40: #{tpu_custom_call.1} parent=35 // pred_fallthru
          _
      $region36: #{tpu_custom_call.1} parent=5 // pred_fallthru
        _
      %p241 = scmp.le.s32.totalorder 1, %s13
      %p242 = scmp.lt.s32.totalorder %s13, 3
      %p243 = pnand %p241, %p242
      %p244 = pneg %p243
      // Predicated region
      $region41: #{tpu_custom_call.1} parent=5 // pred_check
        _
      $region42: #{tpu_custom_call.1} parent=5 // pred_check_branch
        %246 = sbr.rel (%p243) target = $region44
      $region43: #{tpu_custom_call.1} parent=5 // pred_region
        %s247 = ssub.s32 %s13, 1
        // Predicated region
        $region45: #{tpu_custom_call.1} parent=43 // pred_check
          %p248 = pneg %p158
        $region46: #{tpu_custom_call.1} parent=43 // pred_check_branch
          %250 = sbr.rel (%p248) target = $region48
        $region47: #{tpu_custom_call.1} parent=43 // pred_region
          %251 = dma.done [#allocation3], 16
        $region48: #{tpu_custom_call.1} parent=43 // pred_fallthru
          _
        %252 = sfence
        %s253 = smul.u32 2, %s23
        %p254 = scmp.lt.s32.totalorder %s22, 1
        %s255 = scalar_select %p254, %s22, 1
        %p256 = scmp.lt.s32.totalorder %s253, 1
        %s257 = scalar_select %p256, %s253, 1
        %s258 = smul.addr %s255, 2
        %s259 = sadd.s32 %s257, %s258
        %s260 = smul.addr %s259, 4
        %s261 = scalar_lea.vmem %s0, %s260
        %p262 = pneg %p53
        %p263 = pneg %p50
        %p264 = pneg %p74
        %p265 = pneg %p71
        %p266 = pneg %p95
        %p267 = pneg %p92
        %p268 = pneg %p116
        %p269 = pneg %p113
        %p270 = pneg %p137
        %p271 = pneg %p134
        %p272 = pneg %p158
        %p273 = pneg %p155
        %p274 = pneg %p186
        %p275 = pneg %p183
        %s276 = smul.u32 2, %s23
        %p277 = scmp.lt.s32.totalorder %s22, 1
        %s278 = scalar_select %p277, %s22, 1
        %p279 = scmp.lt.s32.totalorder %s276, 1
        %s280 = scalar_select %p279, %s276, 1
        %s281 = smul.addr %s278, 2
        %s282 = sadd.s32 %s280, %s281
        %s283 = smul.addr %s282, 8
        %s284 = scalar_lea.vmem %s6, %s283
        %s285 = smul.u32 2, %s23
        %p286 = scmp.lt.s32.totalorder %s22, 1
        %s287 = scalar_select %p286, %s22, 1
        %p288 = scmp.lt.s32.totalorder %s285, 1
        %s289 = scalar_select %p288, %s285, 1
        %s290 = smul.addr %s287, 2
        %s291 = sadd.s32 %s289, %s290
        %s292 = smul.addr %s291, 4
        %s293 = scalar_lea.vmem %s0, %s292
        %s294 = smul.u32 2, %s23
        %s295 = smul.u32 2, %s23
        %p296 = scmp.lt.s32.totalorder %s22, 1
        %s297 = scalar_select %p296, %s22, 1
        %p298 = scmp.lt.s32.totalorder %s295, 1
        %s299 = scalar_select %p298, %s295, 1
        %s300 = smul.addr %s297, 2
        %s301 = sadd.s32 %s299, %s300
        %s302 = smul.addr %s301, 8
        %s303 = scalar_lea.vmem %s6, %s302
        %s304 = smul.u32 2, %s23
        %v305 = vld [vmem:[%s293] sm:$0xff]
        %v306 = vld [vmem:[%s1] sm:$0xff]
        %v307 = vld [vmem:[%s2] sm:$0xff]
        %s308 = sld [smem:[#allocation2]]
        %310 = vset.pattern.permute.xlu0 0
        %311 = vperm.xlu0 %310, %v307
        %v312 = vpop.permute.xlu0 %311
        %v315 = vcombine.high %v305, %v305
        %vm316 = vcmask 31744
        %v318 = vsel %vm316, %v306, 0
        %vm320 = vcmask 1043456
        %v321 = vsel %vm320, %v305, 0
        %v323 = vsel %vm320, %v315, 0
        %325 = vmatprep.subr.mxu0 0.0
        %326 = vmatpush1.msra.mxu0 0.0
        %327 = vmatprep.subr.mxu0 0.0
        %328 = vmatpush1.msra.mxu0 0.0
        %329 = vmatprep.subr.mxu0 0.0
        %330 = vmatpush1.msra.mxu0 0.0
        %331 = vmatprep.subr.mxu0 0.0
        %332 = vmatpush1.msra.mxu0 0.0
        %333 = vmatprep.subr.mxu0 0.0
        %334 = vmatpush1.msra.mxu0 0.0
        %335 = vmatprep.subr.mxu0 0.0
        %336 = vmatpush1.msra.mxu0 0.0
        %337 = vmatprep.subr.mxu0 0.0
        %338 = vmatpush1.msra.mxu0 0.0
        %339 = vmatprep.subr.mxu0 0.0
        %340 = vmatpush1.msra.mxu0 0.0
        %341 = vmatprep.subr.mxu0 0.0
        %342 = vmatpush1.msra.mxu0 0.0
        %343 = vmatprep.subr.mxu0 0.0
        %344 = vmatpush1.msra.mxu0 0.0
        %345 = vmatprep.subr.mxu0 0.0
        %346 = vmatpush1.msra.mxu0 0.0
        %347 = vmatprep.subr.mxu0 0.0
        %348 = vmatpush1.msra.mxu0 0.0
        %349 = vmatprep.subr.mxu0 0.0
        %350 = vmatpush1.msra.mxu0 0.0
        %351 = vmatprep.subr.mxu0 0.0
        %352 = vmatpush1.msra.mxu0 0.0
        %353 = vmatprep.subr.mxu0 0.0
        %354 = vmatpush1.msra.mxu0 0.0
        %355 = vmatprep.subr.mxu0 %v323
        %356 = vmatpush1.msra.mxu0 %v321
        %357 = vmatprep.subr.mxu0 0.0
        %358 = vmatpush2.msra.mxu0 0.0
        %359 = vmatprep.subr.mxu0 0.0
        %360 = vmatpush2.msra.mxu0 0.0
        %361 = vmatprep.subr.mxu0 0.0
        %362 = vmatpush2.msra.mxu0 0.0
        %363 = vmatprep.subr.mxu0 0.0
        %364 = vmatpush2.msra.mxu0 0.0
        %365 = vmatprep.subr.mxu0 0.0
        %366 = vmatpush2.msra.mxu0 0.0
        %367 = vmatprep.subr.mxu0 0.0
        %368 = vmatpush2.msra.mxu0 0.0
        %369 = vmatprep.subr.mxu0 0.0
        %370 = vmatpush2.msra.mxu0 0.0
        %371 = vmatprep.subr.mxu0 0.0
        %372 = vmatpush2.msra.mxu0 0.0
        %373 = vmatprep.subr.mxu0 0.0
        %374 = vmatpush2.msra.mxu0 0.0
        %375 = vmatprep.subr.mxu0 0.0
        %376 = vmatpush2.msra.mxu0 0.0
        %377 = vmatprep.subr.mxu0 0.0
        %378 = vmatpush2.msra.mxu0 0.0
        %379 = vmatprep.subr.mxu0 0.0
        %380 = vmatpush2.msra.mxu0 0.0
        %381 = vmatprep.subr.mxu0 0.0
        %382 = vmatpush2.msra.mxu0 0.0
        %383 = vmatprep.subr.mxu0 0.0
        %384 = vmatpush2.msra.mxu0 0.0
        %385 = vmatprep.subr.mxu0 0.0
        %386 = vmatpush2.msra.mxu0 0.0
        %387 = vmatprep.subr.mxu0 0.0
        %388 = vmatpush2.msra.mxu0 0.0
        %389 = vmatprep.mubr.f32.mxu0 0.0
        %390 = vmatmul.mubr.f32.gmra.mxu0 %v318
        %v391 = vpop.f32.mrf.mxu0
        %v392 = vadd.f32 %v312, %v391
        %v393 = vpop.f32.mrf.mxu0
        %v394 = vadd.f32 %v312, %v393
        %395 = vdwg.mxu0
        %vm396 = vcmp.gt.f32.partialorder %v392, 0.0
        %vm397 = vcmp.gt.f32.partialorder %v394, 0.0
        %v398 = vstv %s308
        %v399 = vmul.f32 %v398, %v392
        %v400 = vmul.f32 %v398, %v394
        %v401 = vsel %vm396, %v392, %v399
        %v402 = vsel %vm397, %v394, %v400
        %v403 = vld [vmem:[%s3] sm:$0x3f]
        %v404 = vld [vmem:[%s4] sm:$0x3f]
        %s405 = sld [smem:[#allocation2 + $0x1]]
        %407 = vset.pattern.permute.xlu0 0
        %408 = vperm.xlu0 %407, %v404
        %v409 = vpop.permute.xlu0 %408
        %vm411 = vcmask 64512
        %v413 = vsel %vm411, %v403, 0
        %415 = vmatprep.subr.mxu0 0.0
        %416 = vmatpush1.msra.mxu0 0.0
        %417 = vmatprep.subr.mxu0 0.0
        %418 = vmatpush1.msra.mxu0 0.0
        %419 = vmatprep.subr.mxu0 0.0
        %420 = vmatpush1.msra.mxu0 0.0
        %421 = vmatprep.subr.mxu0 0.0
        %422 = vmatpush1.msra.mxu0 0.0
        %423 = vmatprep.subr.mxu0 0.0
        %424 = vmatpush1.msra.mxu0 0.0
        %425 = vmatprep.subr.mxu0 0.0
        %426 = vmatpush1.msra.mxu0 0.0
        %427 = vmatprep.subr.mxu0 0.0
        %428 = vmatpush1.msra.mxu0 0.0
        %429 = vmatprep.subr.mxu0 0.0
        %430 = vmatpush1.msra.mxu0 0.0
        %431 = vmatprep.subr.mxu0 0.0
        %432 = vmatpush1.msra.mxu0 0.0
        %433 = vmatprep.subr.mxu0 0.0
        %434 = vmatpush1.msra.mxu0 0.0
        %435 = vmatprep.subr.mxu0 0.0
        %436 = vmatpush1.msra.mxu0 0.0
        %437 = vmatprep.subr.mxu0 0.0
        %438 = vmatpush1.msra.mxu0 0.0
        %439 = vmatprep.subr.mxu0 0.0
        %440 = vmatpush1.msra.mxu0 0.0
        %441 = vmatprep.subr.mxu0 0.0
        %442 = vmatpush1.msra.mxu0 0.0
        %443 = vmatprep.subr.mxu0 0.0
        %444 = vmatpush1.msra.mxu0 0.0
        %445 = vmatprep.subr.mxu0 %v402
        %446 = vmatpush1.msra.mxu0 %v401
        %447 = vmatprep.subr.mxu0 0.0
        %448 = vmatpush2.msra.mxu0 0.0
        %449 = vmatprep.subr.mxu0 0.0
        %450 = vmatpush2.msra.mxu0 0.0
        %451 = vmatprep.subr.mxu0 0.0
        %452 = vmatpush2.msra.mxu0 0.0
        %453 = vmatprep.subr.mxu0 0.0
        %454 = vmatpush2.msra.mxu0 0.0
        %455 = vmatprep.subr.mxu0 0.0
        %456 = vmatpush2.msra.mxu0 0.0
        %457 = vmatprep.subr.mxu0 0.0
        %458 = vmatpush2.msra.mxu0 0.0
        %459 = vmatprep.subr.mxu0 0.0
        %460 = vmatpush2.msra.mxu0 0.0
        %461 = vmatprep.subr.mxu0 0.0
        %462 = vmatpush2.msra.mxu0 0.0
        %463 = vmatprep.subr.mxu0 0.0
        %464 = vmatpush2.msra.mxu0 0.0
        %465 = vmatprep.subr.mxu0 0.0
        %466 = vmatpush2.msra.mxu0 0.0
        %467 = vmatprep.subr.mxu0 0.0
        %468 = vmatpush2.msra.mxu0 0.0
        %469 = vmatprep.subr.mxu0 0.0
        %470 = vmatpush2.msra.mxu0 0.0
        %471 = vmatprep.subr.mxu0 0.0
        %472 = vmatpush2.msra.mxu0 0.0
        %473 = vmatprep.subr.mxu0 0.0
        %474 = vmatpush2.msra.mxu0 0.0
        %475 = vmatprep.subr.mxu0 0.0
        %476 = vmatpush2.msra.mxu0 0.0
        %477 = vmatprep.subr.mxu0 0.0
        %478 = vmatpush2.msra.mxu0 0.0
        %479 = vmatprep.mubr.f32.mxu0 0.0
        %480 = vmatmul.mubr.f32.gmra.mxu0 %v413
        %v481 = vpop.f32.mrf.mxu0
        %v482 = vadd.f32 %v409, %v481
        %v483 = vpop.f32.mrf.mxu0
        %v484 = vadd.f32 %v409, %v483
        %485 = vdwg.mxu0
        %vm486 = vcmp.gt.f32.partialorder %v482, 0.0
        %vm487 = vcmp.gt.f32.partialorder %v484, 0.0
        %v488 = vstv %s405
        %v489 = vmul.f32 %v488, %v482
        %v490 = vmul.f32 %v488, %v484
        %v491 = vsel %vm486, %v482, %v489
        %v492 = vsel %vm487, %v484, %v490
        %493 = vst [vmem:[%s303] sm:$0x3f] %v491
        %494 = vst [vmem:[%s303 + $0x8] sm:$0x3f] %v492
        %s495 = smul.u32 2, %s23
        %p496 = scmp.lt.s32.totalorder %s22, 1
        %s497 = scalar_select %p496, %s22, 1
        %p498 = scmp.lt.s32.totalorder %s495, 1
        %s499 = scalar_select %p498, %s495, 1
        %s500 = smul.addr %s497, 2
        %s501 = sadd.s32 %s499, %s500
        %s502 = smul.addr %s501, 8
        %s503 = scalar_lea.vmem %s6, %s502
        // Predicated region
        $region49: #{tpu_custom_call.1} parent=43 // pred_check
          %p504 = pneg %p183
        $region50: #{tpu_custom_call.1} parent=43 // pred_check_branch
          %506 = sbr.rel (%p504) target = $region52
        $region51: #{tpu_custom_call.1} parent=43 // pred_region
          %s507 = smul.u32 2, %s23
        $region52: #{tpu_custom_call.1} parent=43 // pred_fallthru
          _
      $region44: #{tpu_custom_call.1} parent=5 // pred_fallthru
        _
      %p508 = scmp.le.s32.totalorder 2, %s13
      // Predicated region
      $region53: #{tpu_custom_call.1} parent=5 // pred_check
        %p509 = pneg %p508
      $region54: #{tpu_custom_call.1} parent=5 // pred_check_branch
        %511 = sbr.rel (%p509) target = $region56
      $region55: #{tpu_custom_call.1} parent=5 // pred_region
        %s512 = ssub.s32 %s13, 2
        // Predicated region
        $region57: #{tpu_custom_call.1} parent=55 // pred_check
          %p513 = pneg %p189
        $region58: #{tpu_custom_call.1} parent=55 // pred_check_branch
          %515 = sbr.rel (%p513) target = $region60
        $region59: #{tpu_custom_call.1} parent=55 // pred_region
          %s516 = smul.u32 2, %s25
          %p517 = scmp.lt.s32.totalorder %s24, 1
          %s518 = scalar_select %p517, %s24, 1
          %p519 = scmp.lt.s32.totalorder %s516, 1
          %s520 = scalar_select %p519, %s516, 1
          %s521 = smul.addr %s518, 2
          %s522 = sadd.s32 %s520, %s521
          %s523 = smul.addr %s522, 8
          %s524 = scalar_lea.vmem %s6, %s523
        $region60: #{tpu_custom_call.1} parent=55 // pred_fallthru
          _
      $region56: #{tpu_custom_call.1} parent=5 // pred_fallthru
        _
    $region6: #{tpu_custom_call.1} parent=1 // loop_footer
      %s17 = sadd.s32 1, %s13
    $region7: #{tpu_custom_call.1} parent=1 // loop_footer_branch
      %12 = sbr.rel target = $region3
    $region8: #{tpu_custom_call.1} parent=1 // loop_exit
      _
    %525 = vsyncpa [#allocation3], 1
    %s526 = scalar_lea.sflag [#allocation3], 1
    %527 = vsyncpa %s526, 1

</llo_original>
